<compile_context>
chip_gen: v6e
topology: v6e:2x2x1
jax: 0.10.0
libtpu: 0.0.40
codegen_flags: <defaults>
</compile_context>

<pallas_src>
import jax
import jax.numpy as jnp
from jax import lax
from jax.experimental import pallas as pl
from jax.experimental.pallas import tpu as pltpu
import numpy as np

_LANE = 128
_SUBLANE = 8


def _round_up(x, m):
    return ((x + m - 1) // m) * m


def _make_kernel(c_out, tc, ct, with_dist, f32_matmul):
    """Per-(head, token-tile, code-tile) kernel body."""
    multi_c = ct > 1

    def kernel(*refs):
        x_ref, e_ref, e2_ref, q_ref, ind_ref = refs[:5]
        pos = 5
        dist_ref = None
        if with_dist:
            dist_ref = refs[pos]
            pos += 1
        if multi_c:
            m_sc, i_sc, q_sc = refs[pos:pos + 3]

        xv = x_ref[...]          # (tn, d)  native dtype
        ev = e_ref[...]          # (tc, d)  native dtype
        e2 = e2_ref[...]         # (1, tc)  f32; +inf on padded codes (mask folded here)

        if f32_matmul:
            x_dot = xv.astype(jnp.float32)
            e_dot = ev.astype(jnp.float32)
        else:                    # bf16 fast path: native dtypes, f32 accumulation
            x_dot, e_dot = xv, ev

        tn = xv.shape[0]

        # key = ||e||^2 - 2 x.e^T ; ||x||^2 is per-row constant -> irrelevant for argmin
        xy = lax.dot_general(
            x_dot, e_dot,
            dimension_numbers=(((1,), (1,)), ((), ())),
            preferred_element_type=jnp.float32)                    # (tn, tc)
        key = e2 - 2.0 * xy

        lane = lax.broadcasted_iota(jnp.int32, (tn, tc), 1)
        loc_min = jnp.min(key, axis=-1, keepdims=True)             # (tn, 1)
        loc_idx = jnp.min(jnp.where(key == loc_min, lane, tc),
                          axis=-1, keepdims=True)                  # (tn, 1) first hit
        # block-local best code via one-hot matmul (MXU gather); 0/1 exact in any dtype
        onehot = (loc_idx == lane).astype(ev.dtype)
        loc_q = jnp.dot(onehot, ev, preferred_element_type=jnp.float32)   # (tn, d) f32

        if with_dist:
            xf = x_dot if f32_matmul else xv.astype(jnp.float32)
            x2 = jnp.sum(xf * xf, axis=-1, keepdims=True)          # (tn, 1)
            d2 = jnp.maximum(x2 + key, 0.0)                        # clamp: no NaN via cancellation
            dist = -jnp.sqrt(d2)
            if ct == 1 and c_out != tc:
                dist = dist[:, :c_out]                             # drop padded code lanes
            dist_ref[...] = dist.astype(dist_ref.dtype)

        if not multi_c:
            ind_ref[...] = loc_idx
            q_ref[...] = loc_q.astype(q_ref.dtype)
        else:
            k = pl.program_id(2)

            @pl.when(k == 0)
            def _init():
                m_sc[...] = loc_min
                i_sc[...] = loc_idx
                q_sc[...] = loc_q

            @pl.when(k > 0)
            def _update():
                better = loc_min < m_sc[...]                       # earlier block wins ties
                m_sc[...] = jnp.where(better, loc_min, m_sc[...])
                i_sc[...] = jnp.where(better, loc_idx + k * tc, i_sc[...])
                q_sc[...] = jnp.where(better, loc_q, q_sc[...])

            @pl.when(k == ct - 1)
            def _finalize():
                ind_ref[...] = i_sc[...]
                q_ref[...] = q_sc[...].astype(q_ref.dtype)

    return kernel


def euclidean_codebook_forward(
        x, embed, *, with_dist=True, f32_matmul=True,
        tn_cap=1024, tc_cap=1024,
        vmem_budget_bytes=40 * 1024 * 1024,        # v7x-safe default; raise on v5e/v6e
        dist_dtype=jnp.float32):
    """Forward of EuclideanCodebook.

    x:     (h, b, n, d) any float dtype.
    embed: (h, c, d)    codebook buffer.

    Returns (quantize (h,b,n,d) in embed dtype, embed_ind (h,b,n) i32,
             dist (h,b,n,c) in dist_dtype or None when with_dist=False).
    """
    h, b, n, d = x.shape
    c = embed.shape[1]
    N = b * n

    x_bytes = x.dtype.itemsize
    e_bytes = embed.dtype.itemsize
    q_dtype = embed.dtype                          # torch's gather keeps the embed dtype
    q_bytes = jnp.dtype(q_dtype).itemsize
    dist_bytes = jnp.dtype(dist_dtype).itemsize

    # ---- codebook tiling: single 128-padded block if small, else TC-sized blocks ----
    tc_cap_eff = max(_LANE, (tc_cap // _LANE) * _LANE)
    c_pad128 = _round_up(c, _LANE)
    tc = c_pad128 if c_pad128 <= tc_cap_eff else tc_cap_eff
    c_pad = _round_up(c, tc)
    ct = c_pad // tc
    c_out = c if ct == 1 else c_pad                # dist last dim emitted by the kernel

    # ---- VMEM footprint (double-buffered tiles + in-kernel f32 temporaries) ----
    def footprint(tn):
        f = 2 * tn * d * x_bytes + 2 * tc * d * e_bytes + 2 * tc * 4    # inputs
        f += 2 * tn * d * q_bytes + 2 * tn * 4                          # quantize + idx out
        if with_dist:
            f += 2 * tn * (c_out if ct == 1 else tc) * dist_bytes       # dist out
        if ct > 1:
            f += tn * d * 4 + 2 * tn * 4                                # running-argmin scratch
        n_tmp = 6 + (2 if with_dist else 0)                             # xy/key/lane/onehot (+d2/dist)
        f += n_tmp * tn * tc * 4
        f += tn * d * 4 + tc * d * 4                                    # f32 casts
        return f

    def fits(tn):
        return footprint(tn) <= vmem_budget_bytes

    # ---- token tiling: always footprint-checked; prefer tn | N (no pad / no slices);
    #      prefer >= 2 programs when h == 1 so v7x's second TensorCore gets work ----
    tn_cap_eff = max(_SUBLANE, (tn_cap // _SUBLANE) * _SUBLANE)
    cap8 = max(_SUBLANE, (min(N, tn_cap_eff) // _SUBLANE) * _SUBLANE)
    divisors = [t for t in range(cap8, 0, -_SUBLANE) if N % t == 0 and t < N]
    full = [N] if N <= tn_cap_eff else []
    generic = [t for t in range(cap8, 0, -_SUBLANE) if N % t != 0]
    prefer_split = (h == 1) and (N >= 256)
    order = (divisors + full + generic) if prefer_split else (full + divisors + generic)
    tn = next((t for t in order if fits(t)), _SUBLANE)
    n_pad = _round_up(N, tn)
    nt = n_pad // tn

    # pack_one(x, 'h * d'); no wrapper-side f32 cast (halves HBM->VMEM for bf16)
    flatten = x.reshape(h, N, d)
    if n_pad != N:
        flatten = jnp.pad(flatten, ((0, 0), (0, n_pad - N), (0, 0)))

    embed_p = embed if c_pad == c else jnp.pad(embed, ((0, 0), (0, c_pad - c), (0, 0)))
    # Per-code squared norms (hoisted); pad mask folded in as +inf -> padded codes
    # automatically lose the argmin and get dist = -inf, no in-kernel masking.
    e2 = jnp.sum(embed_p.astype(jnp.float32) ** 2, axis=-1)          # (h, c_pad)
    if c_pad != c:
        e2 = e2.at[:, c:].set(jnp.inf)
    e2 = e2[:, None, :]                                              # (h, 1, c_pad)

    kernel = _make_kernel(c_out, tc, ct, with_dist, f32_matmul)

    out_shape = [jax.ShapeDtypeStruct((h, n_pad, d), q_dtype),       # quantize
                 jax.ShapeDtypeStruct((h, n_pad, 1), jnp.int32)]     # indices (no transpose)
    out_specs = [pl.BlockSpec((None, tn, d), lambda i, j, k: (i, j, 0)),
                 pl.BlockSpec((None, tn, 1), lambda i, j, k: (i, j, 0))]
    if with_dist:
        out_shape.append(jax.ShapeDtypeStruct((h, n_pad, c_out), dist_dtype))
        if ct == 1:
            # full-extent last dim == c: no padded writeback + no wrapper slice
            out_specs.append(pl.BlockSpec((None, tn, c_out), lambda i, j, k: (i, j, 0)))
        else:
            out_specs.append(pl.BlockSpec((None, tn, tc), lambda i, j, k: (i, j, k)))

    scratch = []
    if ct > 1:
        scratch = [pltpu.VMEM((tn, 1), jnp.float32),   # running min
                   pltpu.VMEM((tn, 1), jnp.int32),     # running argmin (global)
                   pltpu.VMEM((tn, d), jnp.float32)]   # running best code

    flops = 4 * h * n_pad * c_pad * d                  # xy matmul + one-hot gather
    bytes_accessed = (h * n_pad * d * x_bytes
                      + h * nt * c_pad * d * e_bytes   # codebook re-read per N tile
                      + h * nt * c_pad * 4
                      + h * n_pad * d * q_bytes
                      + h * n_pad * 4)
    if with_dist:
        bytes_accessed += h * n_pad * c_out * dist_bytes
    cost = pl.CostEstimate(flops=flops,
                           transcendentals=(h * n_pad * c_pad) if with_dist else 0,
                           bytes_accessed=bytes_accessed)

    fp = footprint(tn)
    vmem_limit = int(min(max(fp * 3 // 2 + (4 << 20), 32 << 20),
                         max(vmem_budget_bytes + (8 << 20), 48 << 20)))

    outs = pl.pallas_call(
        kernel,
        out_shape=tuple(out_shape),
        grid=(h, nt, ct),
        in_specs=[pl.BlockSpec((None, tn, d), lambda i, j, k: (i, j, 0)),   # x tile (resident over k)
                  pl.BlockSpec((None, tc, d), lambda i, j, k: (i, k, 0)),   # codebook block
                  pl.BlockSpec((None, 1, tc), lambda i, j, k: (i, 0, k))],  # e2 block
        out_specs=tuple(out_specs),
        scratch_shapes=tuple(scratch),
        compiler_params=pltpu.CompilerParams(
            dimension_semantics=("parallel", "parallel", "arbitrary"),
            vmem_limit_bytes=vmem_limit),
        cost_estimate=cost,
    )(flatten, embed_p, e2)

    if with_dist:
        q, ind, dist = outs
    else:
        q, ind = outs
        dist = None

    if n_pad != N:
        q = q[:, :N]
        ind = ind[:, :N]
        if with_dist:
            dist = dist[:, :N]
    quantize = q.reshape(h, b, n, d)                   # batched_embedding result
    embed_ind = ind.reshape(h, b, n)                   # unpack_one(embed_ind, ps, 'h *')
    if with_dist:
        if c_out != c:
            dist = dist[:, :, :c]
        dist = dist.reshape(h, b, n, c)                # unpack_one(dist, ps, 'h * d')
    return quantize, embed_ind, dist
    # TODO(synk): forward's `mask` arg is only reshaped and never used in the
    # torch module's returned values -> omitted.


def _reference(x, embed):
    """Pure-JAX reference of the torch forward (quantize, indices, dist)."""
    h, b, n, d = x.shape
    c = embed.shape[1]
    xf = x.astype(jnp.float32).reshape(h, b * n, d)
    ef = embed.astype(jnp.float32)
    x2 = jnp.sum(xf ** 2, -1)[..., :, None]
    e2 = jnp.sum(ef ** 2, -1)[:, None, :]
    xy = jnp.einsum('hid,hjd->hij', xf, ef, precision=lax.Precision.HIGHEST)
    dist = -jnp.sqrt(x2 + e2 - 2.0 * xy)
    ind = jnp.argmax(dist, -1).astype(jnp.int32)
    quant = ef[jnp.arange(h)[:, None], ind]
    return (quant.reshape(h, b, n, d),
            ind.reshape(h, b, n),
            dist.reshape(h, b, n, c))


if __name__ == "__main__":
    key = jax.random.PRNGKey(0)
    kx, ke, kx2, ke2 = jax.random.split(key, 4)

    # ---- test 1: module params dim=32, codebook_size=16, num_codebooks=1 ----
    h, b, n, d, c = 1, 2, 8, 32, 16
    x = jax.random.normal(kx, (h, b, n, d), dtype=jnp.float32)
    embed = jax.random.normal(ke, (h, c, d), dtype=jnp.float32)   # "embed" buffer

    quantize, embed_ind, dist = euclidean_codebook_forward(x, embed)
    jax.block_until_ready((quantize, embed_ind, dist))

    ref_q, ref_ind, ref_dist = _reference(x, embed)
    np.testing.assert_array_equal(np.asarray(embed_ind), np.asarray(ref_ind))
    np.testing.assert_allclose(np.asarray(quantize), np.asarray(ref_q),
                               rtol=1e-5, atol=1e-5)
    np.testing.assert_allclose(np.asarray(dist), np.asarray(ref_dist),
                               rtol=1e-4, atol=1e-4)
    assert quantize.shape == (h, b, n, d)
    assert embed_ind.shape == (h, b, n)
    assert dist.shape == (h, b, n, c)

    # ---- test 2: exercises codebook-axis tiling (ct>1) and token tiling (nt>1) ----
    h2, b2, n2, d2, c2 = 2, 2, 24, 16, 300
    x2 = jax.random.normal(kx2, (h2, b2, n2, d2), dtype=jnp.float32)
    embed2 = jax.random.normal(ke2, (h2, c2, d2), dtype=jnp.float32)
    q2, ind2, dist2 = euclidean_codebook_forward(x2, embed2, tn_cap=32, tc_cap=128)
    jax.block_until_ready((q2, ind2, dist2))

    _, _, rdist2 = _reference(x2, embed2)
    np.testing.assert_allclose(np.asarray(dist2), np.asarray(rdist2),
                               rtol=1e-4, atol=1e-4)
    ki = np.asarray(ind2).reshape(h2, b2 * n2)
    assert (ki >= 0).all() and (ki < c2).all()
    # index is self-consistent with the emitted distances (running-argmin merge)
    dk = np.asarray(dist2).reshape(h2, b2 * n2, c2)
    picked = np.take_along_axis(dk, ki[..., None], axis=-1)[..., 0]
    np.testing.assert_allclose(picked, dk.max(-1), rtol=0, atol=1e-6)
    # quantize rows equal the selected codebook rows
    e2np = np.asarray(embed2)
    gathered = e2np[np.arange(h2)[:, None], ki]
    np.testing.assert_allclose(np.asarray(q2).reshape(h2, b2 * n2, d2), gathered,
                               rtol=1e-5, atol=1e-5)

    print("KERNEL_OK")
</pallas_src>

<mosaic_0001>
module attributes {stable_mosaic.version = 11 : i64} {
  func.func @kernel(%arg0: i32, %arg1: i32, %arg2: i32, %arg3: memref<1x16x32xf32, #tpu.memory_space<vmem>>, %arg4: memref<1x128x32xf32, #tpu.memory_space<vmem>>, %arg5: memref<1x1x128xf32, #tpu.memory_space<vmem>>, %arg6: memref<1x16x32xf32, #tpu.memory_space<vmem>>, %arg7: memref<1x16x1xi32, #tpu.memory_space<vmem>>, %arg8: memref<1x16x16xf32, #tpu.memory_space<vmem>>) attributes {dimension_semantics = [#tpu.dimension_semantics<parallel>, #tpu.dimension_semantics<parallel>, #tpu.dimension_semantics<arbitrary>], iteration_bounds = array<i64: 1, 1, 1>, scalar_prefetch = 0 : i64, scratch_operands = 0 : i64, tpu.core_type = #tpu.core_type<tc>, window_params = [{transform_indices = @transform_0, window_bounds = array<i64: 1, 16, 32>}, {transform_indices = @transform_1, window_bounds = array<i64: 1, 128, 32>}, {transform_indices = @transform_2, window_bounds = array<i64: 1, 1, 128>}, {transform_indices = @transform_3, window_bounds = array<i64: 1, 16, 32>}, {transform_indices = @transform_4, window_bounds = array<i64: 1, 16, 1>}, {transform_indices = @transform_5, window_bounds = array<i64: 1, 16, 16>}]} {
    %c0 = arith.constant 0 : index
    %c0_0 = arith.constant 0 : index
    %c0_1 = arith.constant 0 : index
    %0 = vector.load %arg3[%c0, %c0_0, %c0_1] : memref<1x16x32xf32, #tpu.memory_space<vmem>>, vector<1x16x32xf32>
    %1 = vector.shape_cast %0 : vector<1x16x32xf32> to vector<16x32xf32>
    %c0_2 = arith.constant 0 : index
    %c0_3 = arith.constant 0 : index
    %c0_4 = arith.constant 0 : index
    %2 = vector.load %arg4[%c0_2, %c0_3, %c0_4] : memref<1x128x32xf32, #tpu.memory_space<vmem>>, vector<1x128x32xf32>
    %3 = vector.shape_cast %2 : vector<1x128x32xf32> to vector<128x32xf32>
    %c0_5 = arith.constant 0 : index
    %c0_6 = arith.constant 0 : index
    %c0_7 = arith.constant 0 : index
    %4 = vector.load %arg5[%c0_5, %c0_6, %c0_7] : memref<1x1x128xf32, #tpu.memory_space<vmem>>, vector<1x1x128xf32>
    %5 = vector.shape_cast %4 : vector<1x1x128xf32> to vector<1x128xf32>
    %cst = arith.constant dense<0.000000e+00> : vector<16x128xf32>
    %6 = tpu.matmul %1, %3, %cst {dimension_numbers = #tpu.dot_dimension_numbers<[1], [1], [0], [0], [0, 0, 1, 0], [], []>} : vector<16x32xf32>, vector<128x32xf32>, vector<16x128xf32> -> vector<16x128xf32>
    %cst_8 = arith.constant 2.000000e+00 : f32
    %7 = vector.broadcast %cst_8 : f32 to vector<16x128xf32>
    %8 = arith.mulf %7, %6 : vector<16x128xf32>
    %9 = vector.broadcast %5 : vector<1x128xf32> to vector<16x128xf32>
    %10 = arith.subf %9, %8 : vector<16x128xf32>
    %11 = tpu.iota {dimensions = array<i32: 1>} : vector<16x128xi32>
    %cst_9 = arith.constant dense<0x7F800000> : vector<16xf32>
    %12 = vector.multi_reduction <minimumf>, %10, %cst_9 [1] : vector<16x128xf32> to vector<16xf32>
    %13 = vector.shape_cast %12 : vector<16xf32> to vector<16x1xf32>
    %14 = vector.broadcast %13 : vector<16x1xf32> to vector<16x128xf32>
    %15 = arith.cmpf oeq, %10, %14 : vector<16x128xf32>
    %c128_i32 = arith.constant 128 : i32
    %16 = vector.broadcast %c128_i32 : i32 to vector<16x128xi32>
    %17 = arith.select %15, %11, %16 : vector<16x128xi1>, vector<16x128xi32>
    %cst_10 = arith.constant dense<2147483647> : vector<16xi32>
    %18 = vector.multi_reduction <minsi>, %17, %cst_10 [1] : vector<16x128xi32> to vector<16xi32>
    %19 = vector.shape_cast %18 : vector<16xi32> to vector<16x1xi32>
    %20 = vector.broadcast %19 : vector<16x1xi32> to vector<16x128xi32>
    %21 = arith.cmpi eq, %20, %11 : vector<16x128xi32>
    %22 = arith.extui %21 : vector<16x128xi1> to vector<16x128xi32>
    %23 = arith.sitofp %22 : vector<16x128xi32> to vector<16x128xf32>
    %cst_11 = arith.constant dense<0.000000e+00> : vector<16x32xf32>
    %24 = tpu.matmul %23, %3, %cst_11 {dimension_numbers = #tpu.dot_dimension_numbers<[1], [0], [0], [1], [0, 0, 1, 1], [], []>} : vector<16x128xf32>, vector<128x32xf32>, vector<16x32xf32> -> vector<16x32xf32>
    %25 = arith.mulf %1, %1 : vector<16x32xf32>
    %cst_12 = arith.constant dense<0.000000e+00> : vector<16xf32>
    %26 = vector.multi_reduction <add>, %25, %cst_12 [1] : vector<16x32xf32> to vector<16xf32>
    %27 = vector.shape_cast %26 : vector<16xf32> to vector<16x1xf32>
    %28 = vector.broadcast %27 : vector<16x1xf32> to vector<16x128xf32>
    %29 = arith.addf %28, %10 : vector<16x128xf32>
    %cst_13 = arith.constant 0.000000e+00 : f32
    %30 = vector.broadcast %cst_13 : f32 to vector<16x128xf32>
    %31 = arith.maximumf %29, %30 : vector<16x128xf32>
    %32 = math.sqrt %31 : vector<16x128xf32>
    %cst_14 = arith.constant 0.000000e+00 : f32
    %33 = vector.broadcast %cst_14 : f32 to vector<16x128xf32>
    %34 = arith.subf %33, %32 : vector<16x128xf32>
    %35 = vector.extract_strided_slice %34 {offsets = [0, 0], sizes = [16, 16], strides = [1, 1]} : vector<16x128xf32> to vector<16x16xf32>
    %c0_15 = arith.constant 0 : index
    %c0_16 = arith.constant 0 : index
    %c0_17 = arith.constant 0 : index
    %36 = vector.load %arg8[%c0_15, %c0_16, %c0_17] : memref<1x16x16xf32, #tpu.memory_space<vmem>>, vector<1x16x16xf32>
    %37 = vector.shape_cast %36 : vector<1x16x16xf32> to vector<16x16xf32>
    %38 = vector.shape_cast %35 : vector<16x16xf32> to vector<1x16x16xf32>
    tpu.vector_store %arg8[%c0_15, %c0_16, %c0_17], %38 {strides = array<i32>} : memref<1x16x16xf32, #tpu.memory_space<vmem>>, vector<1x16x16xf32>,
    %c0_18 = arith.constant 0 : index
    %c0_19 = arith.constant 0 : index
    %c0_20 = arith.constant 0 : index
    %39 = vector.load %arg7[%c0_18, %c0_19, %c0_20] : memref<1x16x1xi32, #tpu.memory_space<vmem>>, vector<1x16x1xi32>
    %40 = vector.shape_cast %39 : vector<1x16x1xi32> to vector<16x1xi32>
    %41 = vector.shape_cast %19 : vector<16x1xi32> to vector<1x16x1xi32>
    tpu.vector_store %arg7[%c0_18, %c0_19, %c0_20], %41 {strides = array<i32>} : memref<1x16x1xi32, #tpu.memory_space<vmem>>, vector<1x16x1xi32>,
    %c0_21 = arith.constant 0 : index
    %c0_22 = arith.constant 0 : index
    %c0_23 = arith.constant 0 : index
    %42 = vector.load %arg6[%c0_21, %c0_22, %c0_23] : memref<1x16x32xf32, #tpu.memory_space<vmem>>, vector<1x16x32xf32>
    %43 = vector.shape_cast %42 : vector<1x16x32xf32> to vector<16x32xf32>
    %44 = vector.shape_cast %24 : vector<16x32xf32> to vector<1x16x32xf32>
    tpu.vector_store %arg6[%c0_21, %c0_22, %c0_23], %44 {strides = array<i32>} : memref<1x16x32xf32, #tpu.memory_space<vmem>>, vector<1x16x32xf32>,
    return
  }
  func.func @transform_0(%arg0: i32, %arg1: i32, %arg2: i32) -> (i32, i32, i32) {
    %c0_i32 = arith.constant 0 : i32
    %c0_i32_0 = arith.constant 0 : i32
    return %arg0, %arg1, %c0_i32 : i32, i32, i32
  }
  func.func @transform_1(%arg0: i32, %arg1: i32, %arg2: i32) -> (i32, i32, i32) {
    %c0_i32 = arith.constant 0 : i32
    %c0_i32_0 = arith.constant 0 : i32
    return %arg0, %arg2, %c0_i32 : i32, i32, i32
  }
  func.func @transform_2(%arg0: i32, %arg1: i32, %arg2: i32) -> (i32, i32, i32) {
    %c0_i32 = arith.constant 0 : i32
    %c0_i32_0 = arith.constant 0 : i32
    return %arg0, %c0_i32, %arg2 : i32, i32, i32
  }
  func.func @transform_3(%arg0: i32, %arg1: i32, %arg2: i32) -> (i32, i32, i32) {
    %c0_i32 = arith.constant 0 : i32
    %c0_i32_0 = arith.constant 0 : i32
    return %arg0, %arg1, %c0_i32 : i32, i32, i32
  }
  func.func @transform_4(%arg0: i32, %arg1: i32, %arg2: i32) -> (i32, i32, i32) {
    %c0_i32 = arith.constant 0 : i32
    %c0_i32_0 = arith.constant 0 : i32
    return %arg0, %arg1, %c0_i32 : i32, i32, i32
  }
  func.func @transform_5(%arg0: i32, %arg1: i32, %arg2: i32) -> (i32, i32, i32) {
    %c0_i32 = arith.constant 0 : i32
    %c0_i32_0 = arith.constant 0 : i32
    return %arg0, %arg1, %c0_i32 : i32, i32, i32
  }
}

</mosaic_0001>

<llo_original>
// kernel: tpu_custom_call.1
$region0: #{tpu_custom_call.1}
  #allocation0 [shape = 'u32[]', space=smem, size = 0x4, offset = 0x4, fixed_abs, tag = 'smem constant byte address 0x4 - core index']
  #allocation1 [shape = 'u32[144,128]{1,0:T(1,128)}', space=vmem, size = 0x12000, scoped, tag = 'internal scratch']
  %s0 = inlined_call_operand.vmem [shape: f32[1,16,32], index: 0, kind: input, shape index: {}]
  %s1 = inlined_call_operand.vmem [shape: f32[1,128,32], index: 1, kind: input, shape index: {}]
  %s2 = inlined_call_operand.vmem [shape: f32[1,1,128], index: 2, kind: input, shape index: {}]
  %s3 = inlined_call_operand.hbm [shape: f32[1,16,32], index: 3, kind: output, shape index: {0}]
  %s4 = inlined_call_operand.vmem [shape: s32[1,16,1], index: 4, kind: output, shape index: {1}]
  %s5 = inlined_call_operand.hbm [shape: f32[1,16,16], index: 5, kind: output, shape index: {2}]
  %6 = xla_tuple %s3, %s4, %s5
  %s7 = sld [smem:[#allocation0]]
  $region38: #{tpu_custom_call.1} parent=0
    _
  %s9 = ssub.s32 1, %s7
  %s10 = scalar_select 0, %s9, %s7
  $region1: #{tpu_custom_call.1} parent=0
    #allocation2 [shape = 'u8[8192]{0}', space=vmem, size = 0x2000, scoped, tag = 'output window, operand 0, single buffered']
    #allocation3 [shape = 's32[1]{0}', space=sflag, size = 0x4, scoped, tag = 'scoped memory for tpu_custom_call.1']
    #allocation4 [shape = 'u8[8192]{0}', space=vmem, size = 0x2000, scoped, tag = 'output window, operand 2, single buffered']
    #allocation5 [shape = 's32[1]{0}', space=sflag, size = 0x4, scoped, tag = 'scoped memory for tpu_custom_call.1']
    %11 = vsyncpa [#allocation3], 0
    %12 = vsyncpa [#allocation5], 0
    // Predicated region
    $region2: #{tpu_custom_call.1} parent=1 // pred_check
      _
    $region3: #{tpu_custom_call.1} parent=1 // pred_check_branch
      %14 = sbr.rel (0) target = $region5
    $region4: #{tpu_custom_call.1} parent=1 // pred_region
      _
    $region5: #{tpu_custom_call.1} parent=1 // pred_fallthru
      _
    // Predicated region
    $region6: #{tpu_custom_call.1} parent=1 // pred_check
      _
    $region7: #{tpu_custom_call.1} parent=1 // pred_check_branch
      %16 = sbr.rel (0) target = $region9
    $region8: #{tpu_custom_call.1} parent=1 // pred_region
      _
    $region9: #{tpu_custom_call.1} parent=1 // pred_fallthru
      _
    // Predicated region
    $region10: #{tpu_custom_call.1} parent=1 // pred_check
      _
    $region11: #{tpu_custom_call.1} parent=1 // pred_check_branch
      %18 = sbr.rel (0) target = $region13
    $region12: #{tpu_custom_call.1} parent=1 // pred_region
      _
    $region13: #{tpu_custom_call.1} parent=1 // pred_fallthru
      _
    %v19 = vld [vmem:[%s0] sm:$0xff]
    %v20 = vld [vmem:[%s0 + $0x8] sm:$0xff]
    %v21 = vld [vmem:[%s1] sm:$0xff]
    %v22 = vld [vmem:[%s1 + $0x8] sm:$0xff]
    %v23 = vld [vmem:[%s1 + $0x10] sm:$0xff]
    %v24 = vld [vmem:[%s1 + $0x18] sm:$0xff]
    %v25 = vld [vmem:[%s1 + $0x20] sm:$0xff]
    %v26 = vld [vmem:[%s1 + $0x28] sm:$0xff]
    %v27 = vld [vmem:[%s1 + $0x30] sm:$0xff]
    %v28 = vld [vmem:[%s1 + $0x38] sm:$0xff]
    %v29 = vld [vmem:[%s1 + $0x40] sm:$0xff]
    %v30 = vld [vmem:[%s1 + $0x48] sm:$0xff]
    %v31 = vld [vmem:[%s1 + $0x50] sm:$0xff]
    %v32 = vld [vmem:[%s1 + $0x58] sm:$0xff]
    %v33 = vld [vmem:[%s1 + $0x60] sm:$0xff]
    %v34 = vld [vmem:[%s1 + $0x68] sm:$0xff]
    %v35 = vld [vmem:[%s1 + $0x70] sm:$0xff]
    %v36 = vld [vmem:[%s1 + $0x78] sm:$0xff]
    %v37 = vld [vmem:[%s2] sm:$0x1]
    %vm38 = vcmask 261120
    %v40 = vsel %vm38, %v19, 0
    %v43 = vsel %vm38, %v20, 0
    %v46 = vsel %vm38, %v21, 0
    %v49 = vsel %vm38, %v22, 0
    %v52 = vsel %vm38, %v23, 0
    %v55 = vsel %vm38, %v24, 0
    %v58 = vsel %vm38, %v25, 0
    %v61 = vsel %vm38, %v26, 0
    %v64 = vsel %vm38, %v27, 0
    %v67 = vsel %vm38, %v28, 0
    %v70 = vsel %vm38, %v29, 0
    %v73 = vsel %vm38, %v30, 0
    %v76 = vsel %vm38, %v31, 0
    %v79 = vsel %vm38, %v32, 0
    %v82 = vsel %vm38, %v33, 0
    %v85 = vsel %vm38, %v34, 0
    %v88 = vsel %vm38, %v35, 0
    %v91 = vsel %vm38, %v36, 0
    %93 = vmatprep.subr.mxu0 0.0
    %94 = vmatpush1.xpose.msra.mxu0 %v91
    %95 = vmatprep.subr.mxu0 0.0
    %96 = vmatpush1.xpose.msra.mxu0 %v88
    %97 = vmatprep.subr.mxu0 0.0
    %98 = vmatpush1.xpose.msra.mxu0 %v85
    %99 = vmatprep.subr.mxu0 0.0
    %100 = vmatpush1.xpose.msra.mxu0 %v82
    %101 = vmatprep.subr.mxu0 0.0
    %102 = vmatpush1.xpose.msra.mxu0 %v79
    %103 = vmatprep.subr.mxu0 0.0
    %104 = vmatpush1.xpose.msra.mxu0 %v76
    %105 = vmatprep.subr.mxu0 0.0
    %106 = vmatpush1.xpose.msra.mxu0 %v73
    %107 = vmatprep.subr.mxu0 0.0
    %108 = vmatpush1.xpose.msra.mxu0 %v70
    %109 = vmatprep.subr.mxu0 0.0
    %110 = vmatpush1.xpose.msra.mxu0 %v67
    %111 = vmatprep.subr.mxu0 0.0
    %112 = vmatpush1.xpose.msra.mxu0 %v64
    %113 = vmatprep.subr.mxu0 0.0
    %114 = vmatpush1.xpose.msra.mxu0 %v61
    %115 = vmatprep.subr.mxu0 0.0
    %116 = vmatpush1.xpose.msra.mxu0 %v58
    %117 = vmatprep.subr.mxu0 0.0
    %118 = vmatpush1.xpose.msra.mxu0 %v55
    %119 = vmatprep.subr.mxu0 0.0
    %120 = vmatpush1.xpose.msra.mxu0 %v52
    %121 = vmatprep.subr.mxu0 0.0
    %122 = vmatpush1.xpose.msra.mxu0 %v49
    %123 = vmatprep.subr.mxu0 0.0
    %124 = vmatpush1.xpose.msra.mxu0 %v46
    %125 = vmatprep.subr.mxu0 0.0
    %126 = vmatpush2.xpose.msra.mxu0 0.0
    %127 = vmatprep.subr.mxu0 0.0
    %128 = vmatpush2.xpose.msra.mxu0 0.0
    %129 = vmatprep.subr.mxu0 0.0
    %130 = vmatpush2.xpose.msra.mxu0 0.0
    %131 = vmatprep.subr.mxu0 0.0
    %132 = vmatpush2.xpose.msra.mxu0 0.0
    %133 = vmatprep.subr.mxu0 0.0
    %134 = vmatpush2.xpose.msra.mxu0 0.0
    %135 = vmatprep.subr.mxu0 0.0
    %136 = vmatpush2.xpose.msra.mxu0 0.0
    %137 = vmatprep.subr.mxu0 0.0
    %138 = vmatpush2.xpose.msra.mxu0 0.0
    %139 = vmatprep.subr.mxu0 0.0
    %140 = vmatpush2.xpose.msra.mxu0 0.0
    %141 = vmatprep.subr.mxu0 0.0
    %142 = vmatpush2.xpose.msra.mxu0 0.0
    %143 = vmatprep.subr.mxu0 0.0
    %144 = vmatpush2.xpose.msra.mxu0 0.0
    %145 = vmatprep.subr.mxu0 0.0
    %146 = vmatpush2.xpose.msra.mxu0 0.0
    %147 = vmatprep.subr.mxu0 0.0
    %148 = vmatpush2.xpose.msra.mxu0 0.0
    %149 = vmatprep.subr.mxu0 0.0
    %150 = vmatpush2.xpose.msra.mxu0 0.0
    %151 = vmatprep.subr.mxu0 0.0
    %152 = vmatpush2.xpose.msra.mxu0 0.0
    %153 = vmatprep.subr.mxu0 0.0
    %154 = vmatpush2.xpose.msra.mxu0 0.0
    %155 = vmatprep.subr.mxu0 0.0
    %156 = vmatpush2.xpose.msra.mxu0 0.0
    %157 = vmatprep.mubr.f32.mxu0 0.0
    %158 = vmatmul.mubr.f32.gmra.mxu0 %v40
    %v159 = vpop.f32.mrf.mxu0
    %v160 = vadd.f32 0.0, %v159
    %v161 = vpop.f32.mrf.mxu0
    %162 = vmatprep.mubr.f32.mxu0 0.0
    %163 = vmatmul.mubr.f32.gmra.mxu0 %v43
    %v164 = vpop.f32.mrf.mxu0
    %v165 = vadd.f32 0.0, %v164
    %v166 = vpop.f32.mrf.mxu0
    %167 = vdwg.mxu0
    %v168 = vmul.f32 %v160, 2.0
    %v169 = vmul.f32 %v165, 2.0
    %v171 = vlaneseq
    %v172 = vshrl.u32 %v171, 7
    %v173 = vsub.s32 0, %v172
    %v174 = vrot.slane %v37, %v173
    %v176 = vsub.f32 %v174, %v168
    %v177 = vsub.f32 %v174, %v169
    %v178 = vlaneseq
    %v179 = vand.u32 %v178, 127
    %180 = vmin.xlane.f32.xlu0 %v176
    %v181 = vpop.xlane.xlu0 %180
    %182 = vmin.xlane.f32.xlu0 %v177
    %v183 = vpop.xlane.xlu0 %182
    %vm184 = vcmp.eq.f32.partialorder %v176, %v181
    %vm185 = vcmp.eq.f32.partialorder %v177, %v183
    %v186 = vsel %vm184, %v179, 128
    %v187 = vsel %vm185, %v179, 128
    %v188 = vand.u32 %v186, 65535
    %v189 = vshra.s32 %v186, 16
    %v190 = vcvt.s32.f32 %v188
    %v191 = vcvt.s32.f32 %v189
    %192 = vmin.xlane.f32.xlu0 %v191
    %v193 = vpop.xlane.xlu0 %192
    %vm194 = vcmp.eq.f32.partialorder %v191, %v193
    %v195 = vsel %vm194, %v190, inf
    %196 = vmin.xlane.f32.xlu0 %v195
    %v197 = vpop.xlane.xlu0 %196
    %v198 = vcvt.f32.s32 %v197
    %v199 = vcvt.f32.s32 %v193
    %v200 = vshll.u32 %v199, 16
    %v201 = vadd.s32 %v200, %v198
    %v202 = vand.u32 %v187, 65535
    %v203 = vshra.s32 %v187, 16
    %v204 = vcvt.s32.f32 %v202
    %v205 = vcvt.s32.f32 %v203
    %206 = vmin.xlane.f32.xlu0 %v205
    %v207 = vpop.xlane.xlu0 %206
    %vm208 = vcmp.eq.f32.partialorder %v205, %v207
    %v209 = vsel %vm208, %v204, inf
    %210 = vmin.xlane.f32.xlu0 %v209
    %v211 = vpop.xlane.xlu0 %210
    %v212 = vcvt.f32.s32 %v211
    %v213 = vcvt.f32.s32 %v207
    %v214 = vshll.u32 %v213, 16
    %v215 = vadd.s32 %v214, %v212
    %vm216 = vcmp.eq.s32.totalorder %v201, %v179
    %vm217 = vcmp.eq.s32.totalorder %v215, %v179
    %v218 = vsel %vm216, 1, 0
    %v219 = vsel %vm217, 1, 0
    %v220 = vcvt.s32.f32 %v218
    %v221 = vcvt.s32.f32 %v219
    %222 = vmatprep.subr.mxu0 0.0
    %223 = vmatpush1.msra.mxu0 %v36
    %224 = vmatprep.subr.mxu0 0.0
    %225 = vmatpush1.msra.mxu0 %v35
    %226 = vmatprep.subr.mxu0 0.0
    %227 = vmatpush1.msra.mxu0 %v34
    %228 = vmatprep.subr.mxu0 0.0
    %229 = vmatpush1.msra.mxu0 %v33
    %230 = vmatprep.subr.mxu0 0.0
    %231 = vmatpush1.msra.mxu0 %v32
    %232 = vmatprep.subr.mxu0 0.0
    %233 = vmatpush1.msra.mxu0 %v31
    %234 = vmatprep.subr.mxu0 0.0
    %235 = vmatpush1.msra.mxu0 %v30
    %236 = vmatprep.subr.mxu0 0.0
    %237 = vmatpush1.msra.mxu0 %v29
    %238 = vmatprep.subr.mxu0 0.0
    %239 = vmatpush1.msra.mxu0 %v28
    %240 = vmatprep.subr.mxu0 0.0
    %241 = vmatpush1.msra.mxu0 %v27
    %242 = vmatprep.subr.mxu0 0.0
    %243 = vmatpush1.msra.mxu0 %v26
    %244 = vmatprep.subr.mxu0 0.0
    %245 = vmatpush1.msra.mxu0 %v25
    %246 = vmatprep.subr.mxu0 0.0
    %247 = vmatpush1.msra.mxu0 %v24
    %248 = vmatprep.subr.mxu0 0.0
    %249 = vmatpush1.msra.mxu0 %v23
    %250 = vmatprep.subr.mxu0 0.0
    %251 = vmatpush1.msra.mxu0 %v22
    %252 = vmatprep.subr.mxu0 0.0
    %253 = vmatpush1.msra.mxu0 %v21
    %254 = vmatprep.subr.mxu0 0.0
    %255 = vmatpush2.msra.mxu0 0.0
    %256 = vmatprep.subr.mxu0 0.0
    %257 = vmatpush2.msra.mxu0 0.0
    %258 = vmatprep.subr.mxu0 0.0
    %259 = vmatpush2.msra.mxu0 0.0
    %260 = vmatprep.subr.mxu0 0.0
    %261 = vmatpush2.msra.mxu0 0.0
    %262 = vmatprep.subr.mxu0 0.0
    %263 = vmatpush2.msra.mxu0 0.0
    %264 = vmatprep.subr.mxu0 0.0
    %265 = vmatpush2.msra.mxu0 0.0
    %266 = vmatprep.subr.mxu0 0.0
    %267 = vmatpush2.msra.mxu0 0.0
    %268 = vmatprep.subr.mxu0 0.0
    %269 = vmatpush2.msra.mxu0 0.0
    %270 = vmatprep.subr.mxu0 0.0
    %271 = vmatpush2.msra.mxu0 0.0
    %272 = vmatprep.subr.mxu0 0.0
    %273 = vmatpush2.msra.mxu0 0.0
    %274 = vmatprep.subr.mxu0 0.0
    %275 = vmatpush2.msra.mxu0 0.0
    %276 = vmatprep.subr.mxu0 0.0
    %277 = vmatpush2.msra.mxu0 0.0
    %278 = vmatprep.subr.mxu0 0.0
    %279 = vmatpush2.msra.mxu0 0.0
    %280 = vmatprep.subr.mxu0 0.0
    %281 = vmatpush2.msra.mxu0 0.0
    %282 = vmatprep.subr.mxu0 0.0
    %283 = vmatpush2.msra.mxu0 0.0
    %284 = vmatprep.subr.mxu0 0.0
    %285 = vmatpush2.msra.mxu0 0.0
    %286 = vmatprep.mubr.f32.mxu0 0.0
    %287 = vmatmul.mubr.f32.gmra.mxu0 %v220
    %v288 = vpop.f32.mrf.mxu0
    %v289 = vadd.f32 0.0, %v288
    %v290 = vpop.f32.mrf.mxu0
    %291 = vmatprep.mubr.f32.mxu0 0.0
    %292 = vmatmul.mubr.f32.gmra.mxu0 %v221
    %v293 = vpop.f32.mrf.mxu0
    %v294 = vadd.f32 0.0, %v293
    %v295 = vpop.f32.mrf.mxu0
    %296 = vdwg.mxu0
    %v297 = vmul.f32 %v19, %v19
    %v298 = vmul.f32 %v20, %v20
    %v299 = vsel %vm38, %v297, 0.0
    %300 = vadd.xlane.f32.xlu0 %v299
    %v301 = vpop.xlane.xlu0 %300
    %v302 = vsel %vm38, %v298, 0.0
    %303 = vadd.xlane.f32.xlu0 %v302
    %v304 = vpop.xlane.xlu0 %303
    %v305 = vadd.f32 %v301, %v176
    %v306 = vadd.f32 %v304, %v177
    %v307 = vmax.f32 %v305, 0.0
    %v308 = vmax.f32 %v306, 0.0
    %v309 = vrsqrt.pop %v307
    %v310 = vmul.f32 %v307, %v309
    %vm311 = vcmp.eq.f32.partialorder %v307, inf
    %v312 = vsel %vm311, %v307, %v310
    %vm313 = vcmp.eq.f32.partialorder %v307, 0.0
    %v314 = vand.u32 %v307, 2147483648
    %v315 = vsel %vm313, %v314, %v312
    %v316 = vrsqrt.pop %v308
    %v317 = vmul.f32 %v308, %v316
    %vm318 = vcmp.eq.f32.partialorder %v308, inf
    %v319 = vsel %vm318, %v308, %v317
    %vm320 = vcmp.eq.f32.partialorder %v308, 0.0
    %v321 = vand.u32 %v308, 2147483648
    %v322 = vsel %vm320, %v321, %v319
    %v323 = vsub.f32 0.0, %v315
    %v324 = vsub.f32 0.0, %v322
    %vm325 = vcmask 130048
    %326 = vst.msk [vmem:[#allocation4] sm:$0xff] %vm325, %v323
    %327 = vst.msk [vmem:[#allocation4 + $0x8] sm:$0xff] %vm325, %v324
    %vm328 = vcmask 7168
    %329 = vst.msk [vmem:[%s4] sm:$0xff] %vm328, %v201
    %330 = vst.msk [vmem:[%s4 + $0x8] sm:$0xff] %vm328, %v215
    %331 = vst.msk [vmem:[#allocation2] sm:$0xff] %vm38, %v289
    %332 = vst.msk [vmem:[#allocation2 + $0x8] sm:$0xff] %vm38, %v294
    // Predicated region
    $region14: #{tpu_custom_call.1} parent=1 // pred_check
      _
    $region15: #{tpu_custom_call.1} parent=1 // pred_check_branch
      %334 = sbr.rel (0) target = $region17
    $region16: #{tpu_custom_call.1} parent=1 // pred_region
      %s336 = ssub.s32 256, 256
      %337 = vsyncadd [#allocation3], %s336
      %s338 = sshll.u32 [#allocation2], 4
      %s339 = int_to_ptr.vmem [resolvable:$true] %s338
      %344 = dma.vmem_to_hbm [thread:$0]  %s339, 256, %s3, [#allocation3], 128, 128, 8
    $region17: #{tpu_custom_call.1} parent=1 // pred_fallthru
      _
    // Predicated region
    $region18: #{tpu_custom_call.1} parent=1 // pred_check
      _
    $region19: #{tpu_custom_call.1} parent=1 // pred_check_branch
      %346 = sbr.rel (0) target = $region21
    $region20: #{tpu_custom_call.1} parent=1 // pred_region
      _
    $region21: #{tpu_custom_call.1} parent=1 // pred_fallthru
      _
    // Predicated region
    $region22: #{tpu_custom_call.1} parent=1 // pred_check
      _
    $region23: #{tpu_custom_call.1} parent=1 // pred_check_branch
      %348 = sbr.rel (0) target = $region25
    $region24: #{tpu_custom_call.1} parent=1 // pred_region
      %s350 = ssub.s32 256, 256
      %351 = vsyncadd [#allocation5], %s350
      %s352 = sshll.u32 [#allocation4], 4
      %s353 = int_to_ptr.vmem [resolvable:$true] %s352
      %358 = dma.vmem_to_hbm [thread:$0]  %s353, 256, %s5, [#allocation5], 128, 128, 8
    $region25: #{tpu_custom_call.1} parent=1 // pred_fallthru
      _
    // Predicated region
    $region26: #{tpu_custom_call.1} parent=1 // pred_check
      _
    $region27: #{tpu_custom_call.1} parent=1 // pred_check_branch
      %360 = sbr.rel (0) target = $region29
    $region28: #{tpu_custom_call.1} parent=1 // pred_region
      %361 = dma.done [#allocation3], 256
    $region29: #{tpu_custom_call.1} parent=1 // pred_fallthru
      _
    // Predicated region
    $region30: #{tpu_custom_call.1} parent=1 // pred_check
      _
    $region31: #{tpu_custom_call.1} parent=1 // pred_check_branch
      %363 = sbr.rel (0) target = $region33
    $region32: #{tpu_custom_call.1} parent=1 // pred_region
      _
    $region33: #{tpu_custom_call.1} parent=1 // pred_fallthru
      _
    // Predicated region
    $region34: #{tpu_custom_call.1} parent=1 // pred_check
      _
    $region35: #{tpu_custom_call.1} parent=1 // pred_check_branch
      %365 = sbr.rel (0) target = $region37
    $region36: #{tpu_custom_call.1} parent=1 // pred_region
      %366 = dma.done [#allocation5], 256
    $region37: #{tpu_custom_call.1} parent=1 // pred_fallthru
      _
    %367 = vsyncpa [#allocation3], 1
    %368 = vsyncpa [#allocation5], 1

</llo_original>
